<compile_context>
chip_gen: v7x
topology: tpu7x:2x2x1
jax: 0.10.0
libtpu: 0.0.40
codegen_flags: <defaults>
</compile_context>

<pallas_src>
import functools

import jax
import jax.numpy as jnp
from jax.experimental import pallas as pl
from jax.experimental.pallas import tpu as pltpu

B, DIN, HID, NCLS = 2, 16, 32, 10
EPS = 0.1


def _robust_bounds_kernel(eps, x_ref, w1_ref, w1t_ref, b1_ref, delta_ref,
                          inv2d_ref, w2tp_ref, w2y_ref, b2p_ref, b2y_ref, f_ref):
    f32 = jnp.float32
    x_col = x_ref[0]          # [Din, 1]  current batch row, as a column
    w1 = w1_ref[...]          # [H, Din]
    w1t = w1t_ref[...]        # [Din, H]
    b1c = b1_ref[...]         # [H, 1]
    deltac = delta_ref[...]   # [H, 1]    eps * sum|W1| (hoisted to the wrapper)
    inv2dc = inv2d_ref[...]   # [H, 1]    1 / (2*delta) (hoisted to the wrapper)
    w2tp = w2tp_ref[...]      # [H, CP]   W2^T zero-padded to CP = 128 classes
    w2yc = w2y_ref[0]         # [H, 1]    W2[y_b] as a column
    b2p = b2p_ref[...]        # [1, CP]
    b2y = b2y_ref[0]          # [1, 1]    b2[y_b]

    # --- exact interval pre-activation bounds of the first layer (l-inf ball) ---
    zhat = jnp.dot(w1, x_col, preferred_element_type=f32) + b1c     # [H, 1]
    zl = zhat - deltac
    zu = zhat + deltac
    span = jnp.logical_and(zl < 0.0, zu > 0.0)                      # spanning set I
    d = (zl >= 0.0).astype(f32) + jnp.where(span, zu * inv2dc, 0.0)  # [H, 1]
    l_span = jnp.where(span, zl, 0.0)                               # [H, 1]

    # --- dual backward pass, classes on the lane axis ---
    # nuhat2[h, j] = W2[j, h] - W2[y_b, h]
    nuh2 = w2tp - w2yc                                              # [H, CP]
    nu2 = nuh2 * d                                                  # [H, CP]
    nuh1 = jnp.dot(w1t, nu2, preferred_element_type=f32)            # [Din, CP]

    # f = -J = nu2^T zhat + eps*||nuhat1||_1 - l^T relu(nu2) + (b2[j] - b2[y_b])
    red_din = eps * jnp.sum(jnp.abs(nuh1), axis=0, keepdims=True)   # [1, CP]
    red_h = jnp.sum(zhat * nu2 - l_span * jnp.maximum(nu2, 0.0),
                    axis=0, keepdims=True)                          # [1, CP]
    f_row = red_din + red_h + (b2p - b2y)                           # [1, CP]
    f_ref[0] = f_row.astype(f_ref.dtype)


def robust_bounds(X, y, W1, b1, W2, b2, eps=EPS):
    Bx, Din = X.shape
    H = W1.shape[0]
    C = W2.shape[0]
    CP = pl.cdiv(C, 128) * 128        # classes padded onto the 128-wide lane axis

    # weight-/label-only preprocessing (tiny, done once in the wrapper)
    W1t = W1.T                                                       # [Din, H]
    b1c = b1[:, None]                                                # [H, 1]
    delta = eps * jnp.sum(jnp.abs(W1), axis=1)                       # [H]
    deltac = delta[:, None]                                          # [H, 1]
    inv2dc = jnp.where(delta > 0, 1.0 / (2.0 * delta), 0.0)[:, None]  # [H, 1]
    W2tp = jnp.pad(W2, ((0, CP - C), (0, 0))).T                      # [H, CP]
    b2p = jnp.pad(b2, (0, CP - C))[None, :]                          # [1, CP]
    X3 = X[:, :, None]                                               # [B, Din, 1]
    W2y3 = W2[y][:, :, None]                                         # [B, H, 1]
    b2y3 = b2[y][:, None, None]                                      # [B, 1, 1]

    in_specs = [
        pl.BlockSpec((1, Din, 1), lambda b: (b, 0, 0)),   # X3      (per-batch column)
        pl.BlockSpec((H, Din), lambda b: (0, 0)),         # W1      (resident)
        pl.BlockSpec((Din, H), lambda b: (0, 0)),         # W1t     (resident)
        pl.BlockSpec((H, 1), lambda b: (0, 0)),           # b1
        pl.BlockSpec((H, 1), lambda b: (0, 0)),           # delta
        pl.BlockSpec((H, 1), lambda b: (0, 0)),           # 1/(2*delta)
        pl.BlockSpec((H, CP), lambda b: (0, 0)),          # W2^T padded (resident)
        pl.BlockSpec((1, H, 1), lambda b: (b, 0, 0)),     # W2[y]   (per-batch column)
        pl.BlockSpec((1, CP), lambda b: (0, 0)),          # b2 padded
        pl.BlockSpec((1, 1, 1), lambda b: (b, 0, 0)),     # b2[y]
    ]
    out_specs = pl.BlockSpec((1, 1, CP), lambda b: (b, 0, 0))

    f3 = pl.pallas_call(
        functools.partial(_robust_bounds_kernel, eps),
        out_shape=jax.ShapeDtypeStruct((Bx, 1, CP), X.dtype),
        grid=(Bx,),
        in_specs=in_specs,
        out_specs=out_specs,
        compiler_params=pltpu.CompilerParams(
            dimension_semantics=("parallel",)),
    )(X3, W1, W1t, b1c, deltac, inv2dc, W2tp, W2y3, b2p, b2y3)
    return f3[:, 0, :C]


def robust_bounds_ref(X, y, W1, b1, W2, b2, eps):
    """Pure-JAX reference of the same math (for correctness check)."""
    C = W2.shape[0]
    eye = jnp.eye(C, dtype=X.dtype)
    c = eye[y][:, None, :] - eye[None, :, :]
    zhat = X @ W1.T + b1
    delta = eps * jnp.sum(jnp.abs(W1), axis=1)
    zl, zu = zhat - delta, zhat + delta
    span = (zl < 0) & (zu > 0)
    d = (zl >= 0).astype(X.dtype) + jnp.where(span, zu / jnp.where(span, zu - zl, 1.0), 0.0)
    l_span = jnp.where(span, zl, 0.0)
    nu3 = -c
    nuh2 = jnp.einsum('bjc,ch->bjh', nu3, W2)
    nu2 = nuh2 * d[:, None, :]
    nuh1 = jnp.einsum('bjh,hd->bjd', nu2, W1)
    J = (-jnp.einsum('bjd,bd->bj', nuh1, X)
         - eps * jnp.sum(jnp.abs(nuh1), axis=2)
         - nu2 @ b1
         + c @ b2
         + jnp.sum(l_span[:, None, :] * jnp.maximum(nu2, 0.0), axis=2))
    return -J


if __name__ == "__main__":
    key = jax.random.PRNGKey(0)
    kx, ky, k1, k2, k3, k4 = jax.random.split(key, 6)

    X = jax.random.normal(kx, (B, DIN), dtype=jnp.float32)
    y = jax.random.randint(ky, (B,), 0, NCLS)
    W1 = jax.random.normal(k1, (HID, DIN), dtype=jnp.float32) / jnp.sqrt(DIN)
    b1 = jax.random.normal(k2, (HID,), dtype=jnp.float32) * 0.1
    W2 = jax.random.normal(k3, (NCLS, HID), dtype=jnp.float32) / jnp.sqrt(HID)
    b2 = jax.random.normal(k4, (NCLS,), dtype=jnp.float32) * 0.1

    f = robust_bounds(X, y, W1, b1, W2, b2)
    f = jax.block_until_ready(f)

    f_ref = robust_bounds_ref(X, y, W1, b1, W2, b2, EPS)
    assert f.shape == (B, NCLS) and f.dtype == jnp.float32
    assert jnp.allclose(f, f_ref, atol=1e-4, rtol=1e-4), (f, f_ref)
    # the entry for the true class must be exactly the zero objective (c row = 0)
    assert jnp.allclose(f[jnp.arange(B), y], 0.0, atol=1e-5)

    print("KERNEL_OK")
</pallas_src>

<mosaic_0001>
module attributes {stable_mosaic.version = 11 : i64} {
  func.func @_robust_bounds_kernel(%arg0: i32, %arg1: memref<1x16x1xf32, #tpu.memory_space<vmem>>, %arg2: memref<32x16xf32, #tpu.memory_space<vmem>>, %arg3: memref<16x32xf32, #tpu.memory_space<vmem>>, %arg4: memref<32x1xf32, #tpu.memory_space<vmem>>, %arg5: memref<32x1xf32, #tpu.memory_space<vmem>>, %arg6: memref<32x1xf32, #tpu.memory_space<vmem>>, %arg7: memref<32x128xf32, #tpu.memory_space<vmem>>, %arg8: memref<1x32x1xf32, #tpu.memory_space<vmem>>, %arg9: memref<1x128xf32, #tpu.memory_space<vmem>>, %arg10: memref<1x1x1xf32, #tpu.memory_space<vmem>>, %arg11: memref<1x1x128xf32, #tpu.memory_space<vmem>>) attributes {dimension_semantics = [#tpu.dimension_semantics<parallel>], iteration_bounds = array<i64: 2>, scalar_prefetch = 0 : i64, scratch_operands = 0 : i64, tpu.core_type = #tpu.core_type<tc>, window_params = [{transform_indices = @transform_0, window_bounds = array<i64: 1, 16, 1>}, {pipeline_mode = #tpu.pipeline_mode<synchronous>, transform_indices = @transform_1, window_bounds = array<i64: 32, 16>}, {pipeline_mode = #tpu.pipeline_mode<synchronous>, transform_indices = @transform_2, window_bounds = array<i64: 16, 32>}, {pipeline_mode = #tpu.pipeline_mode<synchronous>, transform_indices = @transform_3, window_bounds = array<i64: 32, 1>}, {pipeline_mode = #tpu.pipeline_mode<synchronous>, transform_indices = @transform_4, window_bounds = array<i64: 32, 1>}, {pipeline_mode = #tpu.pipeline_mode<synchronous>, transform_indices = @transform_5, window_bounds = array<i64: 32, 1>}, {pipeline_mode = #tpu.pipeline_mode<synchronous>, transform_indices = @transform_6, window_bounds = array<i64: 32, 128>}, {transform_indices = @transform_7, window_bounds = array<i64: 1, 32, 1>}, {pipeline_mode = #tpu.pipeline_mode<synchronous>, transform_indices = @transform_8, window_bounds = array<i64: 1, 128>}, {transform_indices = @transform_9, window_bounds = array<i64: 1, 1, 1>}, {transform_indices = @transform_10, window_bounds = array<i64: 1, 1, 128>}]} {
    %c0 = arith.constant 0 : index
    %c0_0 = arith.constant 0 : index
    %c0_1 = arith.constant 0 : index
    %0 = vector.load %arg1[%c0, %c0_0, %c0_1] : memref<1x16x1xf32, #tpu.memory_space<vmem>>, vector<1x16x1xf32>
    %1 = vector.shape_cast %0 : vector<1x16x1xf32> to vector<16x1xf32>
    %c0_2 = arith.constant 0 : index
    %c0_3 = arith.constant 0 : index
    %2 = vector.load %arg2[%c0_2, %c0_3] : memref<32x16xf32, #tpu.memory_space<vmem>>, vector<32x16xf32>
    %c0_4 = arith.constant 0 : index
    %c0_5 = arith.constant 0 : index
    %3 = vector.load %arg3[%c0_4, %c0_5] : memref<16x32xf32, #tpu.memory_space<vmem>>, vector<16x32xf32>
    %c0_6 = arith.constant 0 : index
    %c0_7 = arith.constant 0 : index
    %4 = vector.load %arg4[%c0_6, %c0_7] : memref<32x1xf32, #tpu.memory_space<vmem>>, vector<32x1xf32>
    %c0_8 = arith.constant 0 : index
    %c0_9 = arith.constant 0 : index
    %5 = vector.load %arg5[%c0_8, %c0_9] : memref<32x1xf32, #tpu.memory_space<vmem>>, vector<32x1xf32>
    %c0_10 = arith.constant 0 : index
    %c0_11 = arith.constant 0 : index
    %6 = vector.load %arg6[%c0_10, %c0_11] : memref<32x1xf32, #tpu.memory_space<vmem>>, vector<32x1xf32>
    %c0_12 = arith.constant 0 : index
    %c0_13 = arith.constant 0 : index
    %7 = vector.load %arg7[%c0_12, %c0_13] : memref<32x128xf32, #tpu.memory_space<vmem>>, vector<32x128xf32>
    %c0_14 = arith.constant 0 : index
    %c0_15 = arith.constant 0 : index
    %c0_16 = arith.constant 0 : index
    %8 = vector.load %arg8[%c0_14, %c0_15, %c0_16] : memref<1x32x1xf32, #tpu.memory_space<vmem>>, vector<1x32x1xf32>
    %9 = vector.shape_cast %8 : vector<1x32x1xf32> to vector<32x1xf32>
    %c0_17 = arith.constant 0 : index
    %c0_18 = arith.constant 0 : index
    %10 = vector.load %arg9[%c0_17, %c0_18] : memref<1x128xf32, #tpu.memory_space<vmem>>, vector<1x128xf32>
    %c0_19 = arith.constant 0 : index
    %c0_20 = arith.constant 0 : index
    %c0_21 = arith.constant 0 : index
    %11 = vector.load %arg10[%c0_19, %c0_20, %c0_21] : memref<1x1x1xf32, #tpu.memory_space<vmem>>, vector<1x1x1xf32>
    %12 = vector.shape_cast %11 : vector<1x1x1xf32> to vector<1x1xf32>
    %cst = arith.constant dense<0.000000e+00> : vector<32x1xf32>
    %13 = tpu.matmul %2, %1, %cst {dimension_numbers = #tpu.dot_dimension_numbers<[1], [0], [0], [1], [0, 0, 1, 1], [], []>} : vector<32x16xf32>, vector<16x1xf32>, vector<32x1xf32> -> vector<32x1xf32>
    %14 = arith.addf %13, %4 : vector<32x1xf32>
    %15 = arith.subf %14, %5 : vector<32x1xf32>
    %16 = arith.addf %14, %5 : vector<32x1xf32>
    %cst_22 = arith.constant 0.000000e+00 : f32
    %17 = vector.broadcast %cst_22 : f32 to vector<32x1xf32>
    %18 = arith.cmpf olt, %15, %17 : vector<32x1xf32>
    %cst_23 = arith.constant 0.000000e+00 : f32
    %19 = vector.broadcast %cst_23 : f32 to vector<32x1xf32>
    %20 = arith.cmpf ogt, %16, %19 : vector<32x1xf32>
    %21 = arith.andi %18, %20 : vector<32x1xi1>
    %cst_24 = arith.constant 0.000000e+00 : f32
    %22 = vector.broadcast %cst_24 : f32 to vector<32x1xf32>
    %23 = arith.cmpf oge, %15, %22 : vector<32x1xf32>
    %24 = arith.extui %23 : vector<32x1xi1> to vector<32x1xi32>
    %25 = arith.sitofp %24 : vector<32x1xi32> to vector<32x1xf32>
    %26 = arith.mulf %16, %6 : vector<32x1xf32>
    %cst_25 = arith.constant 0.000000e+00 : f32
    %27 = vector.broadcast %cst_25 : f32 to vector<32x1xf32>
    %28 = arith.select %21, %26, %27 : vector<32x1xi1>, vector<32x1xf32>
    %29 = arith.addf %25, %28 : vector<32x1xf32>
    %cst_26 = arith.constant 0.000000e+00 : f32
    %30 = vector.broadcast %cst_26 : f32 to vector<32x1xf32>
    %31 = arith.select %21, %15, %30 : vector<32x1xi1>, vector<32x1xf32>
    %32 = vector.broadcast %9 : vector<32x1xf32> to vector<32x128xf32>
    %33 = arith.subf %7, %32 : vector<32x128xf32>
    %34 = vector.broadcast %29 : vector<32x1xf32> to vector<32x128xf32>
    %35 = arith.mulf %33, %34 : vector<32x128xf32>
    %cst_27 = arith.constant dense<0.000000e+00> : vector<16x128xf32>
    %36 = tpu.matmul %3, %35, %cst_27 {dimension_numbers = #tpu.dot_dimension_numbers<[1], [0], [0], [1], [0, 0, 1, 1], [], []>} : vector<16x32xf32>, vector<32x128xf32>, vector<16x128xf32> -> vector<16x128xf32>
    %37 = math.absf %36 : vector<16x128xf32>
    %cst_28 = arith.constant dense<0.000000e+00> : vector<128xf32>
    %38 = vector.multi_reduction <add>, %37, %cst_28 [0] : vector<16x128xf32> to vector<128xf32>
    %39 = vector.shape_cast %38 : vector<128xf32> to vector<1x128xf32>
    %cst_29 = arith.constant 1.000000e-01 : f32
    %40 = vector.broadcast %cst_29 : f32 to vector<1x128xf32>
    %41 = arith.mulf %40, %39 : vector<1x128xf32>
    %42 = vector.broadcast %14 : vector<32x1xf32> to vector<32x128xf32>
    %43 = arith.mulf %42, %35 : vector<32x128xf32>
    %cst_30 = arith.constant 0.000000e+00 : f32
    %44 = vector.broadcast %cst_30 : f32 to vector<32x128xf32>
    %45 = arith.maximumf %35, %44 : vector<32x128xf32>
    %46 = vector.broadcast %31 : vector<32x1xf32> to vector<32x128xf32>
    %47 = arith.mulf %46, %45 : vector<32x128xf32>
    %48 = arith.subf %43, %47 : vector<32x128xf32>
    %cst_31 = arith.constant dense<0.000000e+00> : vector<128xf32>
    %49 = vector.multi_reduction <add>, %48, %cst_31 [0] : vector<32x128xf32> to vector<128xf32>
    %50 = vector.shape_cast %49 : vector<128xf32> to vector<1x128xf32>
    %51 = arith.addf %41, %50 : vector<1x128xf32>
    %52 = vector.broadcast %12 : vector<1x1xf32> to vector<1x128xf32>
    %53 = arith.subf %10, %52 : vector<1x128xf32>
    %54 = arith.addf %51, %53 : vector<1x128xf32>
    %c0_32 = arith.constant 0 : index
    %c0_33 = arith.constant 0 : index
    %c0_34 = arith.constant 0 : index
    %55 = vector.load %arg11[%c0_32, %c0_33, %c0_34] : memref<1x1x128xf32, #tpu.memory_space<vmem>>, vector<1x1x128xf32>
    %56 = vector.shape_cast %55 : vector<1x1x128xf32> to vector<1x128xf32>
    %57 = vector.shape_cast %54 : vector<1x128xf32> to vector<1x1x128xf32>
    tpu.vector_store %arg11[%c0_32, %c0_33, %c0_34], %57 {strides = array<i32>} : memref<1x1x128xf32, #tpu.memory_space<vmem>>, vector<1x1x128xf32>,
    return
  }
  func.func @transform_0(%arg0: i32) -> (i32, i32, i32) {
    %c0_i32 = arith.constant 0 : i32
    %c0_i32_0 = arith.constant 0 : i32
    %c0_i32_1 = arith.constant 0 : i32
    return %arg0, %c0_i32, %c0_i32_0 : i32, i32, i32
  }
  func.func @transform_1(%arg0: i32) -> (i32, i32) {
    %c0_i32 = arith.constant 0 : i32
    %c0_i32_0 = arith.constant 0 : i32
    %c0_i32_1 = arith.constant 0 : i32
    return %c0_i32, %c0_i32_0 : i32, i32
  }
  func.func @transform_2(%arg0: i32) -> (i32, i32) {
    %c0_i32 = arith.constant 0 : i32
    %c0_i32_0 = arith.constant 0 : i32
    %c0_i32_1 = arith.constant 0 : i32
    return %c0_i32, %c0_i32_0 : i32, i32
  }
  func.func @transform_3(%arg0: i32) -> (i32, i32) {
    %c0_i32 = arith.constant 0 : i32
    %c0_i32_0 = arith.constant 0 : i32
    %c0_i32_1 = arith.constant 0 : i32
    return %c0_i32, %c0_i32_0 : i32, i32
  }
  func.func @transform_4(%arg0: i32) -> (i32, i32) {
    %c0_i32 = arith.constant 0 : i32
    %c0_i32_0 = arith.constant 0 : i32
    %c0_i32_1 = arith.constant 0 : i32
    return %c0_i32, %c0_i32_0 : i32, i32
  }
  func.func @transform_5(%arg0: i32) -> (i32, i32) {
    %c0_i32 = arith.constant 0 : i32
    %c0_i32_0 = arith.constant 0 : i32
    %c0_i32_1 = arith.constant 0 : i32
    return %c0_i32, %c0_i32_0 : i32, i32
  }
  func.func @transform_6(%arg0: i32) -> (i32, i32) {
    %c0_i32 = arith.constant 0 : i32
    %c0_i32_0 = arith.constant 0 : i32
    %c0_i32_1 = arith.constant 0 : i32
    return %c0_i32, %c0_i32_0 : i32, i32
  }
  func.func @transform_7(%arg0: i32) -> (i32, i32, i32) {
    %c0_i32 = arith.constant 0 : i32
    %c0_i32_0 = arith.constant 0 : i32
    %c0_i32_1 = arith.constant 0 : i32
    return %arg0, %c0_i32, %c0_i32_0 : i32, i32, i32
  }
  func.func @transform_8(%arg0: i32) -> (i32, i32) {
    %c0_i32 = arith.constant 0 : i32
    %c0_i32_0 = arith.constant 0 : i32
    %c0_i32_1 = arith.constant 0 : i32
    return %c0_i32, %c0_i32_0 : i32, i32
  }
  func.func @transform_9(%arg0: i32) -> (i32, i32, i32) {
    %c0_i32 = arith.constant 0 : i32
    %c0_i32_0 = arith.constant 0 : i32
    %c0_i32_1 = arith.constant 0 : i32
    return %arg0, %c0_i32, %c0_i32_0 : i32, i32, i32
  }
  func.func @transform_10(%arg0: i32) -> (i32, i32, i32) {
    %c0_i32 = arith.constant 0 : i32
    %c0_i32_0 = arith.constant 0 : i32
    %c0_i32_1 = arith.constant 0 : i32
    return %arg0, %c0_i32, %c0_i32_0 : i32, i32, i32
  }
}

</mosaic_0001>

<llo_original>
// kernel: tpu_custom_call.1
$region0: #{tpu_custom_call.1}
  #allocation0 [shape = 'u32[]', space=smem, size = 0x4, offset = 0x4, fixed_abs, tag = 'smem constant byte address 0x4 - core index']
  #allocation1 [shape = 'u32[144,128]{1,0:T(1,128)}', space=vmem, size = 0x12000, scoped, tag = 'internal scratch']
  %s0 = inlined_call_operand.vmem [shape: f32[2,16,1], index: 0, kind: input, shape index: {}]
  %s1 = inlined_call_operand.vmem [shape: f32[32,16], index: 1, kind: input, shape index: {}]
  %s2 = inlined_call_operand.vmem [shape: f32[16,32], index: 2, kind: input, shape index: {}]
  %s3 = inlined_call_operand.vmem [shape: f32[32,1], index: 3, kind: input, shape index: {}]
  %s4 = inlined_call_operand.vmem [shape: f32[32,1], index: 4, kind: input, shape index: {}]
  %s5 = inlined_call_operand.vmem [shape: f32[32,1], index: 5, kind: input, shape index: {}]
  %s6 = inlined_call_operand.vmem [shape: f32[32,128], index: 6, kind: input, shape index: {}]
  %s7 = inlined_call_operand.vmem [shape: f32[2,32,1], index: 7, kind: input, shape index: {}]
  %s8 = inlined_call_operand.vmem [shape: f32[1,128], index: 8, kind: input, shape index: {}]
  %s9 = inlined_call_operand.vmem [shape: f32[2,1,1], index: 9, kind: input, shape index: {}]
  %s10 = inlined_call_operand.hbm [shape: f32[2,1,128], index: 10, kind: output, shape index: {}]
  %s11 = sld [smem:[#allocation0]]
  $region73: #{tpu_custom_call.1} parent=0
    _
  %s13 = ssub.s32 1, %s11
  %s14 = scalar_select 0, %s13, %s11
  $region1: #{tpu_custom_call.1} parent=0
    #allocation2 [shape = 'u8[1024]{0}', space=vmem, size = 0x400, scoped, tag = 'output window, operand 0']
    #allocation3 [shape = 's32[2]{0}', space=sflag, size = 0x8, scoped, tag = 'scoped memory for tpu_custom_call.1']
    %15 = vsyncpa [#allocation3], 0
    %s16 = scalar_lea.sflag [#allocation3], 1
    %17 = vsyncpa %s16, 0
    loop: start=0, step=1, limit=4
    $region2: #{tpu_custom_call.1} parent=1 // loop_pre_header
      _
    $region3: #{tpu_custom_call.1} parent=1 // loop_header
      %s19 = sphi 0, %s23
      %p20 = scmp.ge.s32.totalorder %s19, 4
      %s29 = sphi 0, %s31
      %s32 = sphi 0, %s29
      %s33 = sphi 0, %s32
      %s49 = sphi 0, %s33
      %s53 = sphi 0, %s53
      %s55 = sphi 0, %s53
      %s56 = sphi 0, %s55
      %s70 = sphi 0, %s56
      %s74 = sphi 0, %s74
      %s76 = sphi 0, %s74
      %s77 = sphi 0, %s76
      %s91 = sphi 0, %s77
      %s95 = sphi 0, %s95
      %s97 = sphi 0, %s95
      %s98 = sphi 0, %s97
      %s112 = sphi 0, %s98
      %s116 = sphi 0, %s116
      %s118 = sphi 0, %s116
      %s119 = sphi 0, %s118
      %s133 = sphi 0, %s119
      %s137 = sphi 0, %s137
      %s139 = sphi 0, %s137
      %s140 = sphi 0, %s139
      %s154 = sphi 0, %s140
      %s158 = sphi 0, %s158
      %s160 = sphi 0, %s158
      %s161 = sphi 0, %s160
      %s175 = sphi 0, %s161
      %s181 = sphi 0, %s183
      %s184 = sphi 0, %s181
      %s185 = sphi 0, %s184
      %s201 = sphi 0, %s185
      %s205 = sphi 0, %s205
      %s207 = sphi 0, %s205
      %s208 = sphi 0, %s207
      %s222 = sphi 0, %s208
      %s228 = sphi 0, %s230
      %s231 = sphi 0, %s228
      %s232 = sphi 0, %s231
      %s248 = sphi 0, %s232
      %s254 = sphi 0, %s256
      %s257 = sphi 0, %s254
      %s258 = sphi 0, %s257
      %s274 = sphi 0, %s258
    $region4: #{tpu_custom_call.1} parent=1 // loop_header_branch
      %22 = sbr.rel (%p20) target = $region8
    $region5: #{tpu_custom_call.1} parent=1 // loop_body
      %s24 = ssub.s32 %s19, 1
      %s25 = ssub.s32 %s19, 2
      %s26 = sadd.s32 %s19, 1
      %s27 = ssub.s32 %s19, %s26
      %p28 = scmp.eq.s32.totalorder %s27, 0
      %s30 = sadd.s32 %s29, 1
      %s31 = scalar_select %p28, %s29, %s30
      %p34 = pneg %p28
      %p35 = scmp.eq.s32.totalorder %s19, 1
      %p36 = por %p34, %p35
      %p37 = scmp.ne.s32.totalorder %s29, %s32
      %p38 = scmp.eq.s32.totalorder %s19, 0
      %p39 = por %p37, %p38
      %p40 = scmp.ne.s32.totalorder %s29, %s32
      %p41 = scmp.eq.s32.totalorder %s24, 1
      %p42 = por %p40, %p41
      %p43 = scmp.ne.s32.totalorder %s32, %s33
      %p44 = scmp.eq.s32.totalorder %s24, 0
      %p45 = por %p43, %p44
      %p46 = scmp.ne.s32.totalorder %s32, %s33
      %p47 = scmp.eq.s32.totalorder %s25, 1
      %p48 = por %p46, %p47
      %p50 = scmp.ne.s32.totalorder %s33, %s49
      %p51 = scmp.eq.s32.totalorder %s25, 0
      %p52 = por %p50, %p51
      %s54 = sadd.s32 %s53, 1
      %p57 = scmp.eq.s32.totalorder %s19, 1
      %p58 = scmp.ne.s32.totalorder %s53, %s55
      %p59 = scmp.eq.s32.totalorder %s19, 0
      %p60 = por %p58, %p59
      %p61 = scmp.ne.s32.totalorder %s53, %s55
      %p62 = scmp.eq.s32.totalorder %s24, 1
      %p63 = por %p61, %p62
      %p64 = scmp.ne.s32.totalorder %s55, %s56
      %p65 = scmp.eq.s32.totalorder %s24, 0
      %p66 = por %p64, %p65
      %p67 = scmp.ne.s32.totalorder %s55, %s56
      %p68 = scmp.eq.s32.totalorder %s25, 1
      %p69 = por %p67, %p68
      %p71 = scmp.ne.s32.totalorder %s56, %s70
      %p72 = scmp.eq.s32.totalorder %s25, 0
      %p73 = por %p71, %p72
      %s75 = sadd.s32 %s74, 1
      %p78 = scmp.eq.s32.totalorder %s19, 1
      %p79 = scmp.ne.s32.totalorder %s74, %s76
      %p80 = scmp.eq.s32.totalorder %s19, 0
      %p81 = por %p79, %p80
      %p82 = scmp.ne.s32.totalorder %s74, %s76
      %p83 = scmp.eq.s32.totalorder %s24, 1
      %p84 = por %p82, %p83
      %p85 = scmp.ne.s32.totalorder %s76, %s77
      %p86 = scmp.eq.s32.totalorder %s24, 0
      %p87 = por %p85, %p86
      %p88 = scmp.ne.s32.totalorder %s76, %s77
      %p89 = scmp.eq.s32.totalorder %s25, 1
      %p90 = por %p88, %p89
      %p92 = scmp.ne.s32.totalorder %s77, %s91
      %p93 = scmp.eq.s32.totalorder %s25, 0
      %p94 = por %p92, %p93
      %s96 = sadd.s32 %s95, 1
      %p99 = scmp.eq.s32.totalorder %s19, 1
      %p100 = scmp.ne.s32.totalorder %s95, %s97
      %p101 = scmp.eq.s32.totalorder %s19, 0
      %p102 = por %p100, %p101
      %p103 = scmp.ne.s32.totalorder %s95, %s97
      %p104 = scmp.eq.s32.totalorder %s24, 1
      %p105 = por %p103, %p104
      %p106 = scmp.ne.s32.totalorder %s97, %s98
      %p107 = scmp.eq.s32.totalorder %s24, 0
      %p108 = por %p106, %p107
      %p109 = scmp.ne.s32.totalorder %s97, %s98
      %p110 = scmp.eq.s32.totalorder %s25, 1
      %p111 = por %p109, %p110
      %p113 = scmp.ne.s32.totalorder %s98, %s112
      %p114 = scmp.eq.s32.totalorder %s25, 0
      %p115 = por %p113, %p114
      %s117 = sadd.s32 %s116, 1
      %p120 = scmp.eq.s32.totalorder %s19, 1
      %p121 = scmp.ne.s32.totalorder %s116, %s118
      %p122 = scmp.eq.s32.totalorder %s19, 0
      %p123 = por %p121, %p122
      %p124 = scmp.ne.s32.totalorder %s116, %s118
      %p125 = scmp.eq.s32.totalorder %s24, 1
      %p126 = por %p124, %p125
      %p127 = scmp.ne.s32.totalorder %s118, %s119
      %p128 = scmp.eq.s32.totalorder %s24, 0
      %p129 = por %p127, %p128
      %p130 = scmp.ne.s32.totalorder %s118, %s119
      %p131 = scmp.eq.s32.totalorder %s25, 1
      %p132 = por %p130, %p131
      %p134 = scmp.ne.s32.totalorder %s119, %s133
      %p135 = scmp.eq.s32.totalorder %s25, 0
      %p136 = por %p134, %p135
      %s138 = sadd.s32 %s137, 1
      %p141 = scmp.eq.s32.totalorder %s19, 1
      %p142 = scmp.ne.s32.totalorder %s137, %s139
      %p143 = scmp.eq.s32.totalorder %s19, 0
      %p144 = por %p142, %p143
      %p145 = scmp.ne.s32.totalorder %s137, %s139
      %p146 = scmp.eq.s32.totalorder %s24, 1
      %p147 = por %p145, %p146
      %p148 = scmp.ne.s32.totalorder %s139, %s140
      %p149 = scmp.eq.s32.totalorder %s24, 0
      %p150 = por %p148, %p149
      %p151 = scmp.ne.s32.totalorder %s139, %s140
      %p152 = scmp.eq.s32.totalorder %s25, 1
      %p153 = por %p151, %p152
      %p155 = scmp.ne.s32.totalorder %s140, %s154
      %p156 = scmp.eq.s32.totalorder %s25, 0
      %p157 = por %p155, %p156
      %s159 = sadd.s32 %s158, 1
      %p162 = scmp.eq.s32.totalorder %s19, 1
      %p163 = scmp.ne.s32.totalorder %s158, %s160
      %p164 = scmp.eq.s32.totalorder %s19, 0
      %p165 = por %p163, %p164
      %p166 = scmp.ne.s32.totalorder %s158, %s160
      %p167 = scmp.eq.s32.totalorder %s24, 1
      %p168 = por %p166, %p167
      %p169 = scmp.ne.s32.totalorder %s160, %s161
      %p170 = scmp.eq.s32.totalorder %s24, 0
      %p171 = por %p169, %p170
      %p172 = scmp.ne.s32.totalorder %s160, %s161
      %p173 = scmp.eq.s32.totalorder %s25, 1
      %p174 = por %p172, %p173
      %p176 = scmp.ne.s32.totalorder %s161, %s175
      %p177 = scmp.eq.s32.totalorder %s25, 0
      %p178 = por %p176, %p177
      %s179 = ssub.s32 %s19, %s26
      %p180 = scmp.eq.s32.totalorder %s179, 0
      %s182 = sadd.s32 %s181, 1
      %s183 = scalar_select %p180, %s181, %s182
      %p186 = pneg %p180
      %p187 = scmp.eq.s32.totalorder %s19, 1
      %p188 = por %p186, %p187
      %p189 = scmp.ne.s32.totalorder %s181, %s184
      %p190 = scmp.eq.s32.totalorder %s19, 0
      %p191 = por %p189, %p190
      %p192 = scmp.ne.s32.totalorder %s181, %s184
      %p193 = scmp.eq.s32.totalorder %s24, 1
      %p194 = por %p192, %p193
      %p195 = scmp.ne.s32.totalorder %s184, %s185
      %p196 = scmp.eq.s32.totalorder %s24, 0
      %p197 = por %p195, %p196
      %p198 = scmp.ne.s32.totalorder %s184, %s185
      %p199 = scmp.eq.s32.totalorder %s25, 1
      %p200 = por %p198, %p199
      %p202 = scmp.ne.s32.totalorder %s185, %s201
      %p203 = scmp.eq.s32.totalorder %s25, 0
      %p204 = por %p202, %p203
      %s206 = sadd.s32 %s205, 1
      %p209 = scmp.eq.s32.totalorder %s19, 1
      %p210 = scmp.ne.s32.totalorder %s205, %s207
      %p211 = scmp.eq.s32.totalorder %s19, 0
      %p212 = por %p210, %p211
      %p213 = scmp.ne.s32.totalorder %s205, %s207
      %p214 = scmp.eq.s32.totalorder %s24, 1
      %p215 = por %p213, %p214
      %p216 = scmp.ne.s32.totalorder %s207, %s208
      %p217 = scmp.eq.s32.totalorder %s24, 0
      %p218 = por %p216, %p217
      %p219 = scmp.ne.s32.totalorder %s207, %s208
      %p220 = scmp.eq.s32.totalorder %s25, 1
      %p221 = por %p219, %p220
      %p223 = scmp.ne.s32.totalorder %s208, %s222
      %p224 = scmp.eq.s32.totalorder %s25, 0
      %p225 = por %p223, %p224
      %s226 = ssub.s32 %s19, %s26
      %p227 = scmp.eq.s32.totalorder %s226, 0
      %s229 = sadd.s32 %s228, 1
      %s230 = scalar_select %p227, %s228, %s229
      %p233 = pneg %p227
      %p234 = scmp.eq.s32.totalorder %s19, 1
      %p235 = por %p233, %p234
      %p236 = scmp.ne.s32.totalorder %s228, %s231
      %p237 = scmp.eq.s32.totalorder %s19, 0
      %p238 = por %p236, %p237
      %p239 = scmp.ne.s32.totalorder %s228, %s231
      %p240 = scmp.eq.s32.totalorder %s24, 1
      %p241 = por %p239, %p240
      %p242 = scmp.ne.s32.totalorder %s231, %s232
      %p243 = scmp.eq.s32.totalorder %s24, 0
      %p244 = por %p242, %p243
      %p245 = scmp.ne.s32.totalorder %s231, %s232
      %p246 = scmp.eq.s32.totalorder %s25, 1
      %p247 = por %p245, %p246
      %p249 = scmp.ne.s32.totalorder %s232, %s248
      %p250 = scmp.eq.s32.totalorder %s25, 0
      %p251 = por %p249, %p250
      %s252 = ssub.s32 %s19, %s26
      %p253 = scmp.eq.s32.totalorder %s252, 0
      %s255 = sadd.s32 %s254, 1
      %s256 = scalar_select %p253, %s254, %s255
      %p259 = pneg %p253
      %p260 = scmp.eq.s32.totalorder %s19, 1
      %p261 = por %p259, %p260
      %p262 = scmp.ne.s32.totalorder %s254, %s257
      %p263 = scmp.eq.s32.totalorder %s19, 0
      %p264 = por %p262, %p263
      %p265 = scmp.ne.s32.totalorder %s254, %s257
      %p266 = scmp.eq.s32.totalorder %s24, 1
      %p267 = por %p265, %p266
      %p268 = scmp.ne.s32.totalorder %s257, %s258
      %p269 = scmp.eq.s32.totalorder %s24, 0
      %p270 = por %p268, %p269
      %p271 = scmp.ne.s32.totalorder %s257, %s258
      %p272 = scmp.eq.s32.totalorder %s25, 1
      %p273 = por %p271, %p272
      %p275 = scmp.ne.s32.totalorder %s258, %s274
      %p276 = scmp.eq.s32.totalorder %s25, 0
      %p277 = por %p275, %p276
      %p278 = scmp.le.s32.totalorder 1, %s19
      %p279 = scmp.lt.s32.totalorder %s19, 3
      %p280 = pnand %p278, %p279
      %p281 = pneg %p280
      // Predicated region
      $region9: #{tpu_custom_call.1} parent=5 // pred_check
        _
      $region10: #{tpu_custom_call.1} parent=5 // pred_check_branch
        %283 = sbr.rel (%p280) target = $region12
      $region11: #{tpu_custom_call.1} parent=5 // pred_region
        %s284 = ssub.s32 %s19, 1
        // Predicated region
        $region13: #{tpu_custom_call.1} parent=11 // pred_check
          %p285 = pneg %p66
        $region14: #{tpu_custom_call.1} parent=11 // pred_check_branch
          %287 = sbr.rel (%p285) target = $region16
        $region15: #{tpu_custom_call.1} parent=11 // pred_region
          _
        $region16: #{tpu_custom_call.1} parent=11 // pred_fallthru
          _
        // Predicated region
        $region17: #{tpu_custom_call.1} parent=11 // pred_check
          %p288 = pneg %p87
        $region18: #{tpu_custom_call.1} parent=11 // pred_check_branch
          %290 = sbr.rel (%p288) target = $region20
        $region19: #{tpu_custom_call.1} parent=11 // pred_region
          _
        $region20: #{tpu_custom_call.1} parent=11 // pred_fallthru
          _
        // Predicated region
        $region21: #{tpu_custom_call.1} parent=11 // pred_check
          %p291 = pneg %p108
        $region22: #{tpu_custom_call.1} parent=11 // pred_check_branch
          %293 = sbr.rel (%p291) target = $region24
        $region23: #{tpu_custom_call.1} parent=11 // pred_region
          _
        $region24: #{tpu_custom_call.1} parent=11 // pred_fallthru
          _
        // Predicated region
        $region25: #{tpu_custom_call.1} parent=11 // pred_check
          %p294 = pneg %p129
        $region26: #{tpu_custom_call.1} parent=11 // pred_check_branch
          %296 = sbr.rel (%p294) target = $region28
        $region27: #{tpu_custom_call.1} parent=11 // pred_region
          _
        $region28: #{tpu_custom_call.1} parent=11 // pred_fallthru
          _
        // Predicated region
        $region29: #{tpu_custom_call.1} parent=11 // pred_check
          %p297 = pneg %p150
        $region30: #{tpu_custom_call.1} parent=11 // pred_check_branch
          %299 = sbr.rel (%p297) target = $region32
        $region31: #{tpu_custom_call.1} parent=11 // pred_region
          _
        $region32: #{tpu_custom_call.1} parent=11 // pred_fallthru
          _
        // Predicated region
        $region33: #{tpu_custom_call.1} parent=11 // pred_check
          %p300 = pneg %p171
        $region34: #{tpu_custom_call.1} parent=11 // pred_check_branch
          %302 = sbr.rel (%p300) target = $region36
        $region35: #{tpu_custom_call.1} parent=11 // pred_region
          _
        $region36: #{tpu_custom_call.1} parent=11 // pred_fallthru
          _
        // Predicated region
        $region37: #{tpu_custom_call.1} parent=11 // pred_check
          %p303 = pneg %p218
        $region38: #{tpu_custom_call.1} parent=11 // pred_check_branch
          %305 = sbr.rel (%p303) target = $region40
        $region39: #{tpu_custom_call.1} parent=11 // pred_region
          _
        $region40: #{tpu_custom_call.1} parent=11 // pred_fallthru
          _
      $region12: #{tpu_custom_call.1} parent=5 // pred_fallthru
        _
      %p306 = scmp.lt.s32.totalorder %s19, 2
      // Predicated region
      $region41: #{tpu_custom_call.1} parent=5 // pred_check
        %p307 = pneg %p306
      $region42: #{tpu_custom_call.1} parent=5 // pred_check_branch
        %309 = sbr.rel (%p307) target = $region44
      $region43: #{tpu_custom_call.1} parent=5 // pred_region
        // Predicated region
        $region45: #{tpu_custom_call.1} parent=43 // pred_check
          %p310 = pneg %p39
        $region46: #{tpu_custom_call.1} parent=43 // pred_check_branch
          %312 = sbr.rel (%p310) target = $region48
        $region47: #{tpu_custom_call.1} parent=43 // pred_region
          %p313 = scmp.lt.s32.totalorder %s19, 1
          %s314 = scalar_select %p313, %s19, 1
          %s315 = smul.addr %s314, 2
          %s316 = smul.addr %s315, 8
          %s317 = scalar_lea.vmem %s0, %s316
        $region48: #{tpu_custom_call.1} parent=43 // pred_fallthru
          _
        // Predicated region
        $region49: #{tpu_custom_call.1} parent=43 // pred_check
          %p318 = pneg %p191
        $region50: #{tpu_custom_call.1} parent=43 // pred_check_branch
          %320 = sbr.rel (%p318) target = $region52
        $region51: #{tpu_custom_call.1} parent=43 // pred_region
          %p321 = scmp.lt.s32.totalorder %s19, 1
          %s322 = scalar_select %p321, %s19, 1
          %s323 = smul.addr %s322, 4
          %s324 = smul.addr %s323, 8
          %s325 = scalar_lea.vmem %s7, %s324
        $region52: #{tpu_custom_call.1} parent=43 // pred_fallthru
          _
        // Predicated region
        $region53: #{tpu_custom_call.1} parent=43 // pred_check
          %p326 = pneg %p238
        $region54: #{tpu_custom_call.1} parent=43 // pred_check_branch
          %328 = sbr.rel (%p326) target = $region56
        $region55: #{tpu_custom_call.1} parent=43 // pred_region
          %p329 = scmp.lt.s32.totalorder %s19, 1
          %s330 = scalar_select %p329, %s19, 1
          %s331 = scalar_lea.vmem %s9, %s330
        $region56: #{tpu_custom_call.1} parent=43 // pred_fallthru
          _
      $region44: #{tpu_custom_call.1} parent=5 // pred_fallthru
        _
      %p332 = scmp.le.s32.totalorder 1, %s19
      %p333 = scmp.lt.s32.totalorder %s19, 3
      %p334 = pnand %p332, %p333
      %p335 = pneg %p334
      // Predicated region
      $region57: #{tpu_custom_call.1} parent=5 // pred_check
        _
      $region58: #{tpu_custom_call.1} parent=5 // pred_check_branch
        %337 = sbr.rel (%p334) target = $region60
      $region59: #{tpu_custom_call.1} parent=5 // pred_region
        %s338 = ssub.s32 %s19, 1
        %p339 = scmp.lt.s32.totalorder %s24, 1
        %s340 = scalar_select %p339, %s24, 1
        %s341 = smul.addr %s340, 2
        %s342 = smul.addr %s341, 8
        %s343 = scalar_lea.vmem %s0, %s342
        %p344 = pneg %p45
        %p345 = pneg %p42
        %p346 = pneg %p66
        %p347 = pneg %p63
        %p348 = pneg %p87
        %p349 = pneg %p84
        %p350 = pneg %p108
        %p351 = pneg %p105
        %p352 = pneg %p129
        %p353 = pneg %p126
        %p354 = pneg %p150
        %p355 = pneg %p147
        %p356 = pneg %p171
        %p357 = pneg %p168
        %p358 = scmp.lt.s32.totalorder %s24, 1
        %s359 = scalar_select %p358, %s24, 1
        %s360 = smul.addr %s359, 4
        %s361 = smul.addr %s360, 8
        %s362 = scalar_lea.vmem %s7, %s361
        %p363 = pneg %p197
        %p364 = pneg %p194
        %p365 = pneg %p218
        %p366 = pneg %p215
        %p367 = scmp.lt.s32.totalorder %s24, 1
        %s368 = scalar_select %p367, %s24, 1
        %s369 = scalar_lea.vmem %s9, %s368
        %p370 = pneg %p244
        %p371 = pneg %p241
        %p372 = pneg %p270
        %p373 = pneg %p267
        %s374 = sand.u32 %s257, 1
        %s375 = scalar_lea.sflag [#allocation3], %s374
        %s376 = sand.u32 %s257, 1
        %s377 = scalar_lea.vmem [#allocation2], %s376
        %p378 = scmp.lt.s32.totalorder %s24, 1
        %s379 = scalar_select %p378, %s24, 1
        %s380 = smul.addr %s379, 2
        %s381 = smul.addr %s380, 8
        %s382 = scalar_lea.vmem %s0, %s381
        %p383 = scmp.lt.s32.totalorder %s24, 1
        %s384 = scalar_select %p383, %s24, 1
        %s385 = smul.addr %s384, 4
        %s386 = smul.addr %s385, 8
        %s387 = scalar_lea.vmem %s7, %s386
        %p388 = scmp.lt.s32.totalorder %s24, 1
        %s389 = scalar_select %p388, %s24, 1
        %s390 = scalar_lea.vmem %s9, %s389
        %v391 = vld [vmem:[%s382] sm:$0xff]
        %v392 = vld [vmem:[%s382 + $0x8] sm:$0xff]
        %v393 = vld [vmem:[%s1] sm:$0xff]
        %v394 = vld [vmem:[%s1 + $0x8] sm:$0xff]
        %v395 = vld [vmem:[%s1 + $0x10] sm:$0xff]
        %v396 = vld [vmem:[%s1 + $0x18] sm:$0xff]
        %v397 = vld [vmem:[%s2] sm:$0xff]
        %v398 = vld [vmem:[%s2 + $0x8] sm:$0xff]
        %v399 = vld [vmem:[%s3] sm:$0xff]
        %v400 = vld [vmem:[%s3 + $0x8] sm:$0xff]
        %v401 = vld [vmem:[%s3 + $0x10] sm:$0xff]
        %v402 = vld [vmem:[%s3 + $0x18] sm:$0xff]
        %v403 = vld [vmem:[%s4] sm:$0xff]
        %v404 = vld [vmem:[%s4 + $0x8] sm:$0xff]
        %v405 = vld [vmem:[%s4 + $0x10] sm:$0xff]
        %v406 = vld [vmem:[%s4 + $0x18] sm:$0xff]
        %v407 = vld [vmem:[%s5] sm:$0xff]
        %v408 = vld [vmem:[%s5 + $0x8] sm:$0xff]
        %v409 = vld [vmem:[%s5 + $0x10] sm:$0xff]
        %v410 = vld [vmem:[%s5 + $0x18] sm:$0xff]
        %v411 = vld [vmem:[%s6] sm:$0xff]
        %v412 = vld [vmem:[%s6 + $0x8] sm:$0xff]
        %v413 = vld [vmem:[%s6 + $0x10] sm:$0xff]
        %v414 = vld [vmem:[%s6 + $0x18] sm:$0xff]
        %v415 = vld [vmem:[%s387] sm:$0xff]
        %v416 = vld [vmem:[%s387 + $0x8] sm:$0xff]
        %v417 = vld [vmem:[%s387 + $0x10] sm:$0xff]
        %v418 = vld [vmem:[%s387 + $0x18] sm:$0xff]
        %v419 = vld [vmem:[%s8] sm:$0x1]
        %v420 = vld [vmem:[%s390] sm:$0x1]
        %vm421 = vcmask 130048
        %v423 = vsel %vm421, %v393, 0
        %v426 = vsel %vm421, %v394, 0
        %v429 = vsel %vm421, %v395, 0
        %v432 = vsel %vm421, %v396, 0
        %434 = vmatprep.subr.mxu0 0.0
        %435 = vmatpush1.msra.mxu0 %v391
        %436 = vmatprep.subr.mxu0 0.0
        %437 = vmatpush1.msra.mxu0 %v392
        %438 = vmatprep.subr.mxu0 0.0
        %439 = vmatpush1.msra.mxu0 0.0
        %440 = vmatprep.subr.mxu0 0.0
        %441 = vmatpush1.msra.mxu0 0.0
        %442 = vmatprep.subr.mxu0 0.0
        %443 = vmatpush1.msra.mxu0 0.0
        %444 = vmatprep.subr.mxu0 0.0
        %445 = vmatpush1.msra.mxu0 0.0
        %446 = vmatprep.subr.mxu0 0.0
        %447 = vmatpush1.msra.mxu0 0.0
        %448 = vmatprep.subr.mxu0 0.0
        %449 = vmatpush1.msra.mxu0 0.0
        %450 = vmatprep.subr.mxu0 0.0
        %451 = vmatpush1.msra.mxu0 0.0
        %452 = vmatprep.subr.mxu0 0.0
        %453 = vmatpush1.msra.mxu0 0.0
        %454 = vmatprep.subr.mxu0 0.0
        %455 = vmatpush1.msra.mxu0 0.0
        %456 = vmatprep.subr.mxu0 0.0
        %457 = vmatpush1.msra.mxu0 0.0
        %458 = vmatprep.subr.mxu0 0.0
        %459 = vmatpush1.msra.mxu0 0.0
        %460 = vmatprep.subr.mxu0 0.0
        %461 = vmatpush1.msra.mxu0 0.0
        %462 = vmatprep.subr.mxu0 0.0
        %463 = vmatpush1.msra.mxu0 0.0
        %464 = vmatprep.subr.mxu0 0.0
        %465 = vmatpush1.msra.mxu0 0.0
        %466 = vmatprep.subr.mxu0 0.0
        %467 = vmatpush1.msra.mxu0 0.0
        %468 = vmatprep.subr.mxu0 0.0
        %469 = vmatpush1.msra.mxu0 0.0
        %470 = vmatprep.subr.mxu0 0.0
        %471 = vmatpush1.msra.mxu0 0.0
        %472 = vmatprep.subr.mxu0 0.0
        %473 = vmatpush1.msra.mxu0 0.0
        %474 = vmatprep.subr.mxu0 0.0
        %475 = vmatpush1.msra.mxu0 0.0
        %476 = vmatprep.subr.mxu0 0.0
        %477 = vmatpush1.msra.mxu0 0.0
        %478 = vmatprep.subr.mxu0 0.0
        %479 = vmatpush1.msra.mxu0 0.0
        %480 = vmatprep.subr.mxu0 0.0
        %481 = vmatpush1.msra.mxu0 0.0
        %482 = vmatprep.subr.mxu0 0.0
        %483 = vmatpush1.msra.mxu0 0.0
        %484 = vmatprep.subr.mxu0 0.0
        %485 = vmatpush1.msra.mxu0 0.0
        %486 = vmatprep.subr.mxu0 0.0
        %487 = vmatpush1.msra.mxu0 0.0
        %488 = vmatprep.subr.mxu0 0.0
        %489 = vmatpush1.msra.mxu0 0.0
        %490 = vmatprep.subr.mxu0 0.0
        %491 = vmatpush1.msra.mxu0 0.0
        %492 = vmatprep.subr.mxu0 0.0
        %493 = vmatpush1.msra.mxu0 0.0
        %494 = vmatprep.subr.mxu0 0.0
        %495 = vmatpush1.msra.mxu0 0.0
        %496 = vmatprep.subr.mxu0 0.0
        %497 = vmatpush1.msra.mxu0 0.0
        %498 = vmatprep.mubr.f32.mxu0 0.0
        %499 = vmatmul.mubr.f32.gmra.mrb[0].mxu0 %v423
        %v500 = vpop.f32.mrb[0].mxu0
        %v501 = vadd.f32 %v399, %v500
        %v502 = vpop.f32.mrb[0].mxu0
        %503 = vmatprep.mubr.f32.mxu0 0.0
        %504 = vmatmul.mubr.f32.gmra.mrb[0].mxu0 %v426
        %v505 = vpop.f32.mrb[0].mxu0
        %v506 = vadd.f32 %v400, %v505
        %v507 = vpop.f32.mrb[0].mxu0
        %508 = vmatprep.mubr.f32.mxu0 0.0
        %509 = vmatmul.mubr.f32.gmra.mrb[0].mxu0 %v429
        %v510 = vpop.f32.mrb[0].mxu0
        %v511 = vadd.f32 %v401, %v510
        %v512 = vpop.f32.mrb[0].mxu0
        %513 = vmatprep.mubr.f32.mxu0 0.0
        %514 = vmatmul.mubr.f32.gmra.mrb[0].mxu0 %v432
        %v515 = vpop.f32.mrb[0].mxu0
        %v516 = vadd.f32 %v402, %v515
        %v517 = vpop.f32.mrb[0].mxu0
        %518 = vdwg.mxu0
        %v519 = vsub.f32 %v501, %v403
        %v520 = vsub.f32 %v506, %v404
        %v521 = vsub.f32 %v511, %v405
        %v522 = vsub.f32 %v516, %v406
        %v523 = vadd.f32 %v501, %v403
        %v524 = vadd.f32 %v506, %v404
        %v525 = vadd.f32 %v511, %v405
        %v526 = vadd.f32 %v516, %v406
        %vm527 = vcmp.lt.f32.partialorder %v519, 0.0
        %vm528 = vcmp.lt.f32.partialorder %v520, 0.0
        %vm529 = vcmp.lt.f32.partialorder %v521, 0.0
        %vm530 = vcmp.lt.f32.partialorder %v522, 0.0
        %vm531 = vcmp.gt.f32.partialorder %v523, 0.0
        %vm532 = vcmp.gt.f32.partialorder %v524, 0.0
        %vm533 = vcmp.gt.f32.partialorder %v525, 0.0
        %vm534 = vcmp.gt.f32.partialorder %v526, 0.0
        %vm535 = vmand %vm527, %vm531
        %vm536 = vmand %vm528, %vm532
        %vm537 = vmand %vm529, %vm533
        %vm538 = vmand %vm530, %vm534
        %vm539 = vcmp.ge.f32.partialorder %v519, 0.0
        %vm540 = vcmp.ge.f32.partialorder %v520, 0.0
        %vm541 = vcmp.ge.f32.partialorder %v521, 0.0
        %vm542 = vcmp.ge.f32.partialorder %v522, 0.0
        %v543 = vsel %vm539, 1, 0
        %v544 = vsel %vm540, 1, 0
        %v545 = vsel %vm541, 1, 0
        %v546 = vsel %vm542, 1, 0
        %v547 = vcvt.s32.f32 %v543
        %v548 = vcvt.s32.f32 %v544
        %v549 = vcvt.s32.f32 %v545
        %v550 = vcvt.s32.f32 %v546
        %v551 = vmul.f32 %v523, %v407
        %v552 = vmul.f32 %v524, %v408
        %v553 = vmul.f32 %v525, %v409
        %v554 = vmul.f32 %v526, %v410
        %v555 = vsel %vm535, %v551, 0.0
        %v556 = vsel %vm536, %v552, 0.0
        %v557 = vsel %vm537, %v553, 0.0
        %v558 = vsel %vm538, %v554, 0.0
        %v559 = vadd.f32 %v547, %v555
        %v560 = vadd.f32 %v548, %v556
        %v561 = vadd.f32 %v549, %v557
        %v562 = vadd.f32 %v550, %v558
        %v563 = vsel %vm535, %v519, 0.0
        %v564 = vsel %vm536, %v520, 0.0
        %v565 = vsel %vm537, %v521, 0.0
        %v566 = vsel %vm538, %v522, 0.0
        %568 = vset.pattern.permute.xlu0 0
        %569 = vperm.xlu0 %568, %v415
        %v570 = vpop.permute.xlu0 %569
        %573 = vset.pattern.permute.xlu0 0
        %574 = vperm.xlu0 %573, %v416
        %v575 = vpop.permute.xlu0 %574
        %578 = vset.pattern.permute.xlu0 0
        %579 = vperm.xlu0 %578, %v417
        %v580 = vpop.permute.xlu0 %579
        %583 = vset.pattern.permute.xlu0 0
        %584 = vperm.xlu0 %583, %v418
        %v585 = vpop.permute.xlu0 %584
        %v587 = vsub.f32 %v411, %v570
        %v588 = vsub.f32 %v412, %v575
        %v589 = vsub.f32 %v413, %v580
        %v590 = vsub.f32 %v414, %v585
        %592 = vset.pattern.permute.xlu0 0
        %593 = vperm.xlu0 %592, %v559
        %v594 = vpop.permute.xlu0 %593
        %597 = vset.pattern.permute.xlu0 0
        %598 = vperm.xlu0 %597, %v560
        %v599 = vpop.permute.xlu0 %598
        %602 = vset.pattern.permute.xlu0 0
        %603 = vperm.xlu0 %602, %v561
        %v604 = vpop.permute.xlu0 %603
        %607 = vset.pattern.permute.xlu0 0
        %608 = vperm.xlu0 %607, %v562
        %v609 = vpop.permute.xlu0 %608
        %v611 = vmul.f32 %v587, %v594
        %v612 = vmul.f32 %v588, %v599
        %v613 = vmul.f32 %v589, %v604
        %v614 = vmul.f32 %v590, %v609
        %vm615 = vcmask 261120
        %v617 = vsel %vm615, %v397, 0
        %v620 = vsel %vm615, %v398, 0
        %622 = vmatprep.subr.mxu0 0.0
        %623 = vmatpush1.msra.mxu0 %v611
        %624 = vmatprep.subr.mxu0 0.0
        %625 = vmatpush1.msra.mxu0 %v612
        %626 = vmatprep.subr.mxu0 0.0
        %627 = vmatpush1.msra.mxu0 %v613
        %628 = vmatprep.subr.mxu0 0.0
        %629 = vmatpush1.msra.mxu0 %v614
        %630 = vmatprep.subr.mxu0 0.0
        %631 = vmatpush1.msra.mxu0 0.0
        %632 = vmatprep.subr.mxu0 0.0
        %633 = vmatpush1.msra.mxu0 0.0
        %634 = vmatprep.subr.mxu0 0.0
        %635 = vmatpush1.msra.mxu0 0.0
        %636 = vmatprep.subr.mxu0 0.0
        %637 = vmatpush1.msra.mxu0 0.0
        %638 = vmatprep.subr.mxu0 0.0
        %639 = vmatpush1.msra.mxu0 0.0
        %640 = vmatprep.subr.mxu0 0.0
        %641 = vmatpush1.msra.mxu0 0.0
        %642 = vmatprep.subr.mxu0 0.0
        %643 = vmatpush1.msra.mxu0 0.0
        %644 = vmatprep.subr.mxu0 0.0
        %645 = vmatpush1.msra.mxu0 0.0
        %646 = vmatprep.subr.mxu0 0.0
        %647 = vmatpush1.msra.mxu0 0.0
        %648 = vmatprep.subr.mxu0 0.0
        %649 = vmatpush1.msra.mxu0 0.0
        %650 = vmatprep.subr.mxu0 0.0
        %651 = vmatpush1.msra.mxu0 0.0
        %652 = vmatprep.subr.mxu0 0.0
        %653 = vmatpush1.msra.mxu0 0.0
        %654 = vmatprep.subr.mxu0 0.0
        %655 = vmatpush1.msra.mxu0 0.0
        %656 = vmatprep.subr.mxu0 0.0
        %657 = vmatpush1.msra.mxu0 0.0
        %658 = vmatprep.subr.mxu0 0.0
        %659 = vmatpush1.msra.mxu0 0.0
        %660 = vmatprep.subr.mxu0 0.0
        %661 = vmatpush1.msra.mxu0 0.0
        %662 = vmatprep.subr.mxu0 0.0
        %663 = vmatpush1.msra.mxu0 0.0
        %664 = vmatprep.subr.mxu0 0.0
        %665 = vmatpush1.msra.mxu0 0.0
        %666 = vmatprep.subr.mxu0 0.0
        %667 = vmatpush1.msra.mxu0 0.0
        %668 = vmatprep.subr.mxu0 0.0
        %669 = vmatpush1.msra.mxu0 0.0
        %670 = vmatprep.subr.mxu0 0.0
        %671 = vmatpush1.msra.mxu0 0.0
        %672 = vmatprep.subr.mxu0 0.0
        %673 = vmatpush1.msra.mxu0 0.0
        %674 = vmatprep.subr.mxu0 0.0
        %675 = vmatpush1.msra.mxu0 0.0
        %676 = vmatprep.subr.mxu0 0.0
        %677 = vmatpush1.msra.mxu0 0.0
        %678 = vmatprep.subr.mxu0 0.0
        %679 = vmatpush1.msra.mxu0 0.0
        %680 = vmatprep.subr.mxu0 0.0
        %681 = vmatpush1.msra.mxu0 0.0
        %682 = vmatprep.subr.mxu0 0.0
        %683 = vmatpush1.msra.mxu0 0.0
        %684 = vmatprep.subr.mxu0 0.0
        %685 = vmatpush1.msra.mxu0 0.0
        %686 = vmatprep.mubr.f32.mxu0 0.0
        %687 = vmatmul.mubr.f32.gmra.mrb[0].mxu0 %v617
        %v688 = vpop.f32.mrb[0].mxu0
        %v689 = vadd.f32 0.0, %v688
        %v690 = vpop.f32.mrb[0].mxu0
        %691 = vmatprep.mubr.f32.mxu0 0.0
        %692 = vmatmul.mubr.f32.gmra.mrb[0].mxu0 %v620
        %v693 = vpop.f32.mrb[0].mxu0
        %v694 = vadd.f32 0.0, %v693
        %v695 = vpop.f32.mrb[0].mxu0
        %696 = vdwg.mxu0
        %v697 = vand.u32 2147483647, %v689
        %v698 = vand.u32 2147483647, %v694
        %v699 = vadd.f32 %v697, %v698
        %v700 = vrot.slane %v699, 4
        %v701 = vadd.f32 %v699, %v700
        %v702 = vrot.slane %v701, 2
        %v703 = vadd.f32 %v701, %v702
        %v704 = vrot.slane %v703, 1
        %v705 = vadd.f32 %v703, %v704
        %v706 = vmul.f32 %v705, 0.1
        %708 = vset.pattern.permute.xlu0 0
        %709 = vperm.xlu0 %708, %v501
        %v710 = vpop.permute.xlu0 %709
        %713 = vset.pattern.permute.xlu0 0
        %714 = vperm.xlu0 %713, %v506
        %v715 = vpop.permute.xlu0 %714
        %718 = vset.pattern.permute.xlu0 0
        %719 = vperm.xlu0 %718, %v511
        %v720 = vpop.permute.xlu0 %719
        %723 = vset.pattern.permute.xlu0 0
        %724 = vperm.xlu0 %723, %v516
        %v725 = vpop.permute.xlu0 %724
        %v727 = vmul.f32 %v710, %v611
        %v728 = vmul.f32 %v715, %v612
        %v729 = vmul.f32 %v720, %v613
        %v730 = vmul.f32 %v725, %v614
        %v731 = vmax.f32 %v611, 0.0
        %v732 = vmax.f32 %v612, 0.0
        %v733 = vmax.f32 %v613, 0.0
        %v734 = vmax.f32 %v614, 0.0
        %736 = vset.pattern.permute.xlu0 0
        %737 = vperm.xlu0 %736, %v563
        %v738 = vpop.permute.xlu0 %737
        %741 = vset.pattern.permute.xlu0 0
        %742 = vperm.xlu0 %741, %v564
        %v743 = vpop.permute.xlu0 %742
        %746 = vset.pattern.permute.xlu0 0
        %747 = vperm.xlu0 %746, %v565
        %v748 = vpop.permute.xlu0 %747
        %751 = vset.pattern.permute.xlu0 0
        %752 = vperm.xlu0 %751, %v566
        %v753 = vpop.permute.xlu0 %752
        %v755 = vmul.f32 %v738, %v731
        %v756 = vmul.f32 %v743, %v732
        %v757 = vmul.f32 %v748, %v733
        %v758 = vmul.f32 %v753, %v734
        %v759 = vsub.f32 %v727, %v755
        %v760 = vsub.f32 %v728, %v756
        %v761 = vsub.f32 %v729, %v757
        %v762 = vsub.f32 %v730, %v758
        %v763 = vadd.f32 %v759, %v760
        %v764 = vadd.f32 %v763, %v761
        %v765 = vadd.f32 %v764, %v762
        %v766 = vrot.slane %v765, 4
        %v767 = vadd.f32 %v765, %v766
        %v768 = vrot.slane %v767, 2
        %v769 = vadd.f32 %v767, %v768
        %v770 = vrot.slane %v769, 1
        %v771 = vadd.f32 %v769, %v770
        %v772 = vadd.f32 %v706, %v771
        %774 = vset.pattern.permute.xlu0 0
        %775 = vperm.xlu0 %774, %v420
        %v776 = vpop.permute.xlu0 %775
        %v778 = vlaneseq
        %v779 = vshrl.u32 %v778, 7
        %v780 = vsub.s32 0, %v779
        %v781 = vrot.slane %v776, %v780
        %v782 = vsub.f32 %v419, %v781
        %v783 = vadd.f32 %v772, %v782
        %784 = vst [vmem:[%s377] sm:$0x1] %v783
        %s785 = sand.u32 %s257, 1
        %s786 = scalar_lea.sflag [#allocation3], %s785
        %s787 = sand.u32 %s257, 1
        %s788 = scalar_lea.vmem [#allocation2], %s787
        // Predicated region
        $region61: #{tpu_custom_call.1} parent=59 // pred_check
          %p789 = pneg %p267
        $region62: #{tpu_custom_call.1} parent=59 // pred_check_branch
          %791 = sbr.rel (%p789) target = $region64
        $region63: #{tpu_custom_call.1} parent=59 // pred_region
          %s793 = ssub.s32 16, 16
          %794 = vsyncadd %s786, %s793
          %s795 = smul.addr %s24, 16
          %s796 = scalar_lea.hbm %s10, %s795
          %s798 = sshll.u32 %s788, 4
          %s799 = int_to_ptr.vmem [resolvable:$true] %s798
          %801 = dma.vmem_to_hbm [thread:$0]  %s799, 16, %s796, %s786
        $region64: #{tpu_custom_call.1} parent=59 // pred_fallthru
          _
      $region60: #{tpu_custom_call.1} parent=5 // pred_fallthru
        _
      %p802 = scmp.le.s32.totalorder 2, %s19
      // Predicated region
      $region65: #{tpu_custom_call.1} parent=5 // pred_check
        %p803 = pneg %p802
      $region66: #{tpu_custom_call.1} parent=5 // pred_check_branch
        %805 = sbr.rel (%p803) target = $region68
      $region67: #{tpu_custom_call.1} parent=5 // pred_region
        %s806 = ssub.s32 %s19, 2
        // Predicated region
        $region69: #{tpu_custom_call.1} parent=67 // pred_check
          %p807 = pneg %p273
        $region70: #{tpu_custom_call.1} parent=67 // pred_check_branch
          %809 = sbr.rel (%p807) target = $region72
        $region71: #{tpu_custom_call.1} parent=67 // pred_region
          %s810 = sand.u32 %s258, 1
          %s811 = scalar_lea.sflag [#allocation3], %s810
          %s812 = sand.u32 %s258, 1
          %s813 = scalar_lea.vmem [#allocation2], %s812
          %814 = dma.done %s811, 16
        $region72: #{tpu_custom_call.1} parent=67 // pred_fallthru
          _
      $region68: #{tpu_custom_call.1} parent=5 // pred_fallthru
        _
    $region6: #{tpu_custom_call.1} parent=1 // loop_footer
      %s23 = sadd.s32 1, %s19
    $region7: #{tpu_custom_call.1} parent=1 // loop_footer_branch
      %18 = sbr.rel target = $region3
    $region8: #{tpu_custom_call.1} parent=1 // loop_exit
      _
    %815 = vsyncpa [#allocation3], 1
    %s816 = scalar_lea.sflag [#allocation3], 1
    %817 = vsyncpa %s816, 1

</llo_original>
